<compile_context>
chip_gen: v7x
topology: tpu7x:2x2x1
jax: 0.10.0
libtpu: 0.0.40
codegen_flags: <defaults>
</compile_context>

<pallas_src>
import math
import functools

import jax
import jax.numpy as jnp
from jax.experimental import pallas as pl
from jax.experimental.pallas import tpu as pltpu


MXU_DTYPE = jnp.bfloat16          # matmul operand dtype (f32 accumulation)
_VMEM_LIMIT = 32 * 1024 * 1024    # explicit scoped-VMEM limit (safe on v5e/v6e/v7x)
_LN_EPS = 1e-5


def _round_up(x, m):
    return ((x + m - 1) // m) * m


def _row_tile(m, target=512):
    return min(target, _round_up(m, 8))


def _mosaic_params(n_parallel_axes):
    return pltpu.CompilerParams(
        dimension_semantics=("parallel",) * n_parallel_axes,
        vmem_limit_bytes=_VMEM_LIMIT,
    )


# ----------------------------- generic linear ------------------------------

def _linear_kernel(x_ref, w_ref, b_ref, o_ref):
    x = x_ref[...].astype(MXU_DTYPE)
    y = jnp.dot(x, w_ref[...], preferred_element_type=jnp.float32) + b_ref[...]
    o_ref[...] = y.astype(o_ref.dtype)


def linear(x, w, b, *, tm=512):
    """y = x @ w + b over the last axis; tiled + pipelined over flattened rows."""
    orig = x.shape
    K = orig[-1]
    N = w.shape[1]
    xs = x.reshape(-1, K)
    M = xs.shape[0]
    tm = _row_tile(M, tm)
    out = pl.pallas_call(
        _linear_kernel,
        out_shape=jax.ShapeDtypeStruct((M, N), jnp.float32),
        grid=(pl.cdiv(M, tm),),
        in_specs=[
            pl.BlockSpec((tm, K), lambda i: (i, 0)),
            pl.BlockSpec((K, N), lambda i: (0, 0)),   # resident weights
            pl.BlockSpec((1, N), lambda i: (0, 0)),
        ],
        out_specs=pl.BlockSpec((tm, N), lambda i: (i, 0)),
        compiler_params=_mosaic_params(1),
    )(xs, w, b.reshape(1, N))
    return out.reshape(orig[:-1] + (N,))


# -------------------- fused FFN + residual + LayerNorm ---------------------

def _ffn_res_ln_kernel(x_ref, w1_ref, b1_ref, w2_ref, b2_ref, g_ref, beta_ref,
                       o_ref, *, activation):
    x = x_ref[...]                                                    # (tm, D) f32
    h = jnp.dot(x.astype(MXU_DTYPE), w1_ref[...],
                preferred_element_type=jnp.float32) + b1_ref[...]
    if activation == "relu":
        h = jnp.maximum(h, 0.0)
    else:  # exact (erf-based) GELU, matching torch.nn.functional.gelu default
        h = 0.5 * h * (1.0 + jax.lax.erf(h * (1.0 / math.sqrt(2.0))))
    y = jnp.dot(h.astype(MXU_DTYPE), w2_ref[...],
                preferred_element_type=jnp.float32) + b2_ref[...]
    z = x + y                                                         # residual
    mu = jnp.mean(z, axis=-1, keepdims=True)
    var = jnp.mean((z - mu) ** 2, axis=-1, keepdims=True)
    zhat = (z - mu) * jax.lax.rsqrt(var + _LN_EPS)
    o_ref[...] = (zhat * g_ref[...] + beta_ref[...]).astype(o_ref.dtype)


def ffn_res_ln(x, w1, b1, w2, b2, gamma, beta, *, activation="gelu", tm=512):
    """LayerNorm(x + conv2(act(conv1(x)))) with kernel_size-1 convs, fused."""
    orig = x.shape
    D = orig[-1]
    F = w1.shape[1]
    xs = x.reshape(-1, D)
    M = xs.shape[0]
    tm = _row_tile(M, tm)
    out = pl.pallas_call(
        functools.partial(_ffn_res_ln_kernel, activation=activation),
        out_shape=jax.ShapeDtypeStruct((M, D), jnp.float32),
        grid=(pl.cdiv(M, tm),),
        in_specs=[
            pl.BlockSpec((tm, D), lambda i: (i, 0)),
            pl.BlockSpec((D, F), lambda i: (0, 0)),
            pl.BlockSpec((1, F), lambda i: (0, 0)),
            pl.BlockSpec((F, D), lambda i: (0, 0)),
            pl.BlockSpec((1, D), lambda i: (0, 0)),
            pl.BlockSpec((1, D), lambda i: (0, 0)),
            pl.BlockSpec((1, D), lambda i: (0, 0)),
        ],
        out_specs=pl.BlockSpec((tm, D), lambda i: (i, 0)),
        compiler_params=_mosaic_params(1),
    )(xs, w1, b1.reshape(1, F), w2, b2.reshape(1, D),
      gamma.reshape(1, D), beta.reshape(1, D))
    return out.reshape(orig)


# ---------------- attention kernels (head-packed, fused epilogue) ----------

def _attn_epilogue(ctx, res, wo_ref, bo_ref, g_ref, beta_ref, o_ref):
    """out-projection + residual add + LayerNorm, shared by both kernels."""
    y = jnp.dot(ctx.astype(MXU_DTYPE), wo_ref[...],
                preferred_element_type=jnp.float32) + bo_ref[...]
    z = res + y
    mu = jnp.mean(z, axis=-1, keepdims=True)
    var = jnp.mean((z - mu) ** 2, axis=-1, keepdims=True)
    zhat = (z - mu) * jax.lax.rsqrt(var + _LN_EPS)
    o_ref[0] = (zhat * g_ref[...] + beta_ref[...]).astype(o_ref.dtype)


def _attn_cross_kernel(q_ref, kv_ref, res_ref, wo_ref, bo_ref, g_ref, beta_ref,
                       o_ref, acc_ref, *, n_heads, scale):
    q = q_ref[0]                       # (L, D) f32 (already query-projected)
    kv = kv_ref[0]                     # (S, 2D)
    L, D = q.shape
    E = D // n_heads
    k = kv[:, :D]
    v = kv[:, D:]
    for h in range(n_heads):
        qh = q[:, h * E:(h + 1) * E]
        kh = k[:, h * E:(h + 1) * E]
        vh = v[:, h * E:(h + 1) * E]
        s = jax.lax.dot_general(qh, kh, (((1,), (1,)), ((), ())),
                                preferred_element_type=jnp.float32) * scale
        m = jnp.max(s, axis=-1, keepdims=True)
        p = jnp.exp(s - m)
        series = p * pl.reciprocal(jnp.sum(p, axis=-1, keepdims=True), approx=True)
        acc_ref[:, h * E:(h + 1) * E] = jnp.dot(
            series, vh, preferred_element_type=jnp.float32)
    _attn_epilogue(acc_ref[...], res_ref[0], wo_ref, bo_ref, g_ref, beta_ref, o_ref)


def _attn_prior_kernel(qkvs_ref, d2_ref, res_ref, wo_ref, bo_ref, g_ref, beta_ref,
                       o_ref, sc_ref, se_ref, pr_ref, sg_ref, acc_ref,
                       *, n_heads, scale):
    # TODO(synk): for very large win_size on v7x (64 MiB VMEM), tile this kernel
    # over query rows instead of emitting full (L, L) blocks per grid step.
    x = qkvs_ref[0]                    # (L, 3D + H) fused q|k|v|sigma projection
    L = x.shape[0]
    H = n_heads
    D = (x.shape[1] - H) // 3
    E = D // H
    q = x[:, :D]
    k = x[:, D:2 * D]
    v = x[:, 2 * D:3 * D]
    sig_raw = x[:, 3 * D:]             # (L, H)
    d2 = d2_ref[...]                   # (L, L), precomputed -dist^2 / 2

    # sigma transform (all heads at once): sigmoid(5x)+1e-5, then 3**sigma - 1
    sig = jax.nn.sigmoid(sig_raw * 5.0) + 1e-5
    sig = jnp.exp(sig * math.log(3.0)) - 1.0
    sg_ref[0] = sig.astype(sg_ref.dtype)

    inv_sqrt2pi = 1.0 / math.sqrt(2.0 * math.pi)
    for h in range(H):
        qh = q[:, h * E:(h + 1) * E]
        kh = k[:, h * E:(h + 1) * E]
        vh = v[:, h * E:(h + 1) * E]
        s = jax.lax.dot_general(qh, kh, (((1,), (1,)), ((), ())),
                                preferred_element_type=jnp.float32) * scale
        m = jnp.max(s, axis=-1, keepdims=True)
        p = jnp.exp(s - m)
        series = p * pl.reciprocal(jnp.sum(p, axis=-1, keepdims=True), approx=True)

        sigc = sig[:, h:h + 1]                                   # (L, 1)
        inv_sig = pl.reciprocal(sigc, approx=True)
        prior = (inv_sqrt2pi * inv_sig) * jnp.exp(d2 * (inv_sig * inv_sig))

        sc_ref[h] = s.astype(sc_ref.dtype)          # attn_wo_soft (scaled scores)
        se_ref[h] = series.astype(se_ref.dtype)     # attn (softmax series)
        pr_ref[h] = prior.astype(pr_ref.dtype)      # mask / Gaussian prior
        acc_ref[:, h * E:(h + 1) * E] = jnp.dot(
            series, vh, preferred_element_type=jnp.float32)

    _attn_epilogue(acc_ref[...], res_ref[0], wo_ref, bo_ref, g_ref, beta_ref, o_ref)


def attention_block(ap, q_in, kv_in, residual, gamma, beta, use_prior=False):
    """AttentionLayer(AnomalyAttention) + residual add + LayerNorm, fused.

    Returns (LN(residual + out_projection(attention)), scores, series, prior, sigma).
    """
    B, L, D = q_in.shape
    S = kv_in.shape[1]
    H = ap["n_heads"]
    E = D // H
    scale = 1.0 / math.sqrt(E)
    g2 = gamma.reshape(1, D)
    b2 = beta.reshape(1, D)
    bo2 = ap["bo"].reshape(1, D)

    if use_prior:
        # self-attention in this model: Q, K, V, sigma all come from q_in.
        qkvs = linear(q_in, ap["w_qkvs"], ap["b_qkvs"])            # (B, L, 3D+H)
        x1, scores, series, prior, sig = pl.pallas_call(
            functools.partial(_attn_prior_kernel, n_heads=H, scale=scale),
            out_shape=(
                jax.ShapeDtypeStruct((B, L, D), jnp.float32),       # LN output
                jax.ShapeDtypeStruct((B * H, L, L), jnp.float32),   # scores
                jax.ShapeDtypeStruct((B * H, L, L), jnp.float32),   # series
                jax.ShapeDtypeStruct((B * H, L, L), jnp.float32),   # prior
                jax.ShapeDtypeStruct((B, L, H), jnp.float32),       # sigma (L, H)
            ),
            grid=(B,),
            in_specs=[
                pl.BlockSpec((1, L, 3 * D + H), lambda b: (b, 0, 0)),
                pl.BlockSpec((L, L), lambda b: (0, 0)),
                pl.BlockSpec((1, L, D), lambda b: (b, 0, 0)),
                pl.BlockSpec((D, D), lambda b: (0, 0)),
                pl.BlockSpec((1, D), lambda b: (0, 0)),
                pl.BlockSpec((1, D), lambda b: (0, 0)),
                pl.BlockSpec((1, D), lambda b: (0, 0)),
            ],
            out_specs=(
                pl.BlockSpec((1, L, D), lambda b: (b, 0, 0)),
                pl.BlockSpec((H, L, L), lambda b: (b, 0, 0)),
                pl.BlockSpec((H, L, L), lambda b: (b, 0, 0)),
                pl.BlockSpec((H, L, L), lambda b: (b, 0, 0)),
                pl.BlockSpec((1, L, H), lambda b: (b, 0, 0)),
            ),
            scratch_shapes=[pltpu.VMEM((L, D), jnp.float32)],
            compiler_params=_mosaic_params(1),
        )(qkvs, ap["neg_half_d2"], residual, ap["wo"], bo2, g2, b2)

        scores = scores.reshape(B, H, L, L)
        series = series.reshape(B, H, L, L)
        prior = prior.reshape(B, H, L, L)
        # sigma is a pure broadcast -> expand lazily in JAX, not in the kernel.
        sigma_full = jnp.broadcast_to(
            jnp.transpose(sig, (0, 2, 1))[..., None], (B, H, L, L))
        return x1, scores, series, prior, sigma_full

    # cross-attention: fused K|V projection (one HBM read of kv_in).
    q = linear(q_in, ap["wq"], ap["bq"])                           # (B, L, D)
    kv = linear(kv_in, ap["w_kv"], ap["b_kv"])                     # (B, S, 2D)
    x1 = pl.pallas_call(
        functools.partial(_attn_cross_kernel, n_heads=H, scale=scale),
        out_shape=jax.ShapeDtypeStruct((B, L, D), jnp.float32),
        grid=(B,),
        in_specs=[
            pl.BlockSpec((1, L, D), lambda b: (b, 0, 0)),
            pl.BlockSpec((1, S, 2 * D), lambda b: (b, 0, 0)),
            pl.BlockSpec((1, L, D), lambda b: (b, 0, 0)),
            pl.BlockSpec((D, D), lambda b: (0, 0)),
            pl.BlockSpec((1, D), lambda b: (0, 0)),
            pl.BlockSpec((1, D), lambda b: (0, 0)),
            pl.BlockSpec((1, D), lambda b: (0, 0)),
        ],
        out_specs=pl.BlockSpec((1, L, D), lambda b: (b, 0, 0)),
        scratch_shapes=[pltpu.VMEM((L, D), jnp.float32)],
        compiler_params=_mosaic_params(1),
    )(q, kv, residual, ap["wo"], bo2, g2, b2)
    return x1, None, None, None, None


# --------------------------- EncoderLayer forward ---------------------------

def encoder_layer_forward(p, x, activation="gelu"):
    """Matches EncoderLayer.forward (eval mode, noise=None, attn_mask=None)."""
    # TODO(synk): noise/prompt concatenation path (noise is not None) not implemented.
    D = p["d_model"]
    if len(x) == 2:
        x_t_in, x_c_in = x
        # t_projection and o_projection share the same input -> fused matmul.
        to = linear(x_t_in, p["w_to"], p["b_to"])                   # (B, L, 2D)
        x_t = to[..., :D]
        x_o = to[..., D:]
    else:
        x_t_in, x_c_in, x_o_in = x
        x_t = linear(x_t_in, p["w_t"], p["b_t"])
        x_o = linear(x_o_in, p["w_o"], p["b_o"])
    x_c = linear(x_c_in, p["w_c"], p["b_c"])

    gamma, beta = p["ln_g"], p["ln_b"]
    ap = p["attn"]

    # branch t: cross-attention Q=x_t, K=V=x_c (fused out-proj + add + LN)
    x1, _, _, _, _ = attention_block(ap, x_t, x_c, x_t, gamma, beta)
    out_t = ffn_res_ln(x1, p["w1"], p["b1"], p["w2"], p["b2"], gamma, beta,
                       activation=activation)

    # branch c: cross-attention Q=x_c, K=V=x_t
    x2, _, _, _, _ = attention_block(ap, x_c, x_t, x_c, gamma, beta)
    out_c = ffn_res_ln(x2, p["w3"], p["b3"], p["w4"], p["b4"], gamma, beta,
                       activation=activation)

    # branch o: self-attention with Gaussian prior (AnomalyAttention)
    x3, attn_wo_soft, attn, mask, sigma = attention_block(
        ap, x_o, x_o, x_o, gamma, beta, use_prior=True)
    out_o = ffn_res_ln(x3, p["w5"], p["b5"], p["w6"], p["b6"], gamma, beta,
                       activation=activation)

    return (out_t, out_c, out_o), attn_wo_soft, attn, mask, sigma


# ----------------------------- parameter init -------------------------------

def init_encoder_layer_params(key, *, d_model, n_heads, d_ff, win_size,
                              weight_scale=0.05):
    keys = iter(jax.random.split(key, 64))

    def w(shape):  # matmul weights stored in bf16 (MXU operand dtype)
        return (weight_scale
                * jax.random.normal(next(keys), shape, jnp.float32)).astype(MXU_DTYPE)

    def b(n):
        return jnp.zeros((n,), jnp.float32)

    D, H, F = d_model, n_heads, d_ff

    wq, wk, wv, wsig = w((D, D)), w((D, D)), w((D, D)), w((D, H))
    idx = jnp.arange(win_size, dtype=jnp.float32)
    dist = jnp.abs(idx[:, None] - idx[None, :])
    attn = dict(
        n_heads=H,
        wq=wq, bq=b(D),
        w_kv=jnp.concatenate([wk, wv], axis=1),
        b_kv=jnp.concatenate([b(D), b(D)]),
        w_qkvs=jnp.concatenate([wq, wk, wv, wsig], axis=1),
        b_qkvs=jnp.concatenate([b(D), b(D), b(D), b(H)]),
        wo=w((D, D)), bo=b(D),
        neg_half_d2=(-(dist * dist) * 0.5).astype(jnp.float32),
    )

    w_t, w_o = w((D, D)), w((D, D))
    return dict(
        d_model=D,
        w_t=w_t, b_t=b(D),
        w_o=w_o, b_o=b(D),
        w_to=jnp.concatenate([w_t, w_o], axis=1),
        b_to=jnp.concatenate([b(D), b(D)]),
        w_c=w((D, D)), b_c=b(D),
        ln_g=jnp.ones((D,), jnp.float32), ln_b=jnp.zeros((D,), jnp.float32),
        # conv1..conv6 (kernel_size=1 Conv1d == feature matmul on NLC layout)
        w1=w((D, F)), b1=b(F), w2=w((F, D)), b2=b(D),
        w3=w((D, F)), b3=b(F), w4=w((F, D)), b4=b(D),
        w5=w((D, F)), b5=b(F), w6=w((F, D)), b6=b(D),
        attn=attn,
    )


# ----------------------------------- main ------------------------------------

if __name__ == "__main__":
    B = 2
    L = 8          # temporal tokens (win_size)
    C = 4          # channel tokens (second input of the 2-tuple)
    d_model = 32
    n_heads = 4
    d_ff = 64

    key = jax.random.PRNGKey(0)
    pkey, k1, k2 = jax.random.split(key, 3)
    params = init_encoder_layer_params(
        pkey, d_model=d_model, n_heads=n_heads, d_ff=d_ff, win_size=L)

    x_t = jax.random.normal(k1, (B, L, d_model), dtype=jnp.float32)
    x_c = jax.random.normal(k2, (B, C, d_model), dtype=jnp.float32)

    (out_t, out_c, out_o), attn_wo_soft, attn, mask, sigma = \
        encoder_layer_forward(params, (x_t, x_c))

    for a in (out_t, out_c, out_o, attn_wo_soft, attn, mask, sigma):
        jax.block_until_ready(a)

    assert out_t.shape == (B, L, d_model)
    assert out_c.shape == (B, C, d_model)
    assert out_o.shape == (B, L, d_model)
    assert attn_wo_soft.shape == (B, n_heads, L, L)
    assert attn.shape == (B, n_heads, L, L)
    assert mask.shape == (B, n_heads, L, L)
    assert sigma.shape == (B, n_heads, L, L)
    assert bool(jnp.all(jnp.isfinite(out_t)))
    assert bool(jnp.all(jnp.isfinite(out_o)))

    print("KERNEL_OK")
</pallas_src>

<mosaic_0001>
module attributes {stable_mosaic.version = 11 : i64} {
  func.func @_linear_kernel(%arg0: i32, %arg1: memref<16x32xf32, #tpu.memory_space<vmem>>, %arg2: memref<32x64xbf16, #tpu.memory_space<vmem>>, %arg3: memref<1x64xf32, #tpu.memory_space<vmem>>, %arg4: memref<16x64xf32, #tpu.memory_space<vmem>>) attributes {dimension_semantics = [#tpu.dimension_semantics<parallel>], iteration_bounds = array<i64: 1>, scalar_prefetch = 0 : i64, scratch_operands = 0 : i64, tpu.core_type = #tpu.core_type<tc>, window_params = [{transform_indices = @transform_0, window_bounds = array<i64: 16, 32>}, {pipeline_mode = #tpu.pipeline_mode<synchronous>, transform_indices = @transform_1, window_bounds = array<i64: 32, 64>}, {pipeline_mode = #tpu.pipeline_mode<synchronous>, transform_indices = @transform_2, window_bounds = array<i64: 1, 64>}, {transform_indices = @transform_3, window_bounds = array<i64: 16, 64>}]} {
    %c0 = arith.constant 0 : index
    %c0_0 = arith.constant 0 : index
    %0 = vector.load %arg1[%c0, %c0_0] : memref<16x32xf32, #tpu.memory_space<vmem>>, vector<16x32xf32>
    %1 = arith.truncf %0 : vector<16x32xf32> to vector<16x32xbf16>
    %c0_1 = arith.constant 0 : index
    %c0_2 = arith.constant 0 : index
    %2 = vector.load %arg2[%c0_1, %c0_2] : memref<32x64xbf16, #tpu.memory_space<vmem>>, vector<32x64xbf16>
    %cst = arith.constant dense<0.000000e+00> : vector<16x64xf32>
    %3 = tpu.matmul %1, %2, %cst {dimension_numbers = #tpu.dot_dimension_numbers<[1], [0], [0], [1], [0, 0, 1, 1], [], []>} : vector<16x32xbf16>, vector<32x64xbf16>, vector<16x64xf32> -> vector<16x64xf32>
    %c0_3 = arith.constant 0 : index
    %c0_4 = arith.constant 0 : index
    %4 = vector.load %arg3[%c0_3, %c0_4] : memref<1x64xf32, #tpu.memory_space<vmem>>, vector<1x64xf32>
    %5 = vector.broadcast %4 : vector<1x64xf32> to vector<16x64xf32>
    %6 = arith.addf %3, %5 : vector<16x64xf32>
    %c0_5 = arith.constant 0 : index
    %c0_6 = arith.constant 0 : index
    %7 = vector.load %arg4[%c0_5, %c0_6] : memref<16x64xf32, #tpu.memory_space<vmem>>, vector<16x64xf32>
    tpu.vector_store %arg4[%c0_5, %c0_6], %6 {strides = array<i32>} : memref<16x64xf32, #tpu.memory_space<vmem>>, vector<16x64xf32>,
    return
  }
  func.func @transform_0(%arg0: i32) -> (i32, i32) {
    %c0_i32 = arith.constant 0 : i32
    %c0_i32_0 = arith.constant 0 : i32
    return %arg0, %c0_i32 : i32, i32
  }
  func.func @transform_1(%arg0: i32) -> (i32, i32) {
    %c0_i32 = arith.constant 0 : i32
    %c0_i32_0 = arith.constant 0 : i32
    %c0_i32_1 = arith.constant 0 : i32
    return %c0_i32, %c0_i32_0 : i32, i32
  }
  func.func @transform_2(%arg0: i32) -> (i32, i32) {
    %c0_i32 = arith.constant 0 : i32
    %c0_i32_0 = arith.constant 0 : i32
    %c0_i32_1 = arith.constant 0 : i32
    return %c0_i32, %c0_i32_0 : i32, i32
  }
  func.func @transform_3(%arg0: i32) -> (i32, i32) {
    %c0_i32 = arith.constant 0 : i32
    %c0_i32_0 = arith.constant 0 : i32
    return %arg0, %c0_i32 : i32, i32
  }
}

</mosaic_0001>

<llo_original>
// kernel: tpu_custom_call.1
$region0: #{tpu_custom_call.1}
  #allocation0 [shape = 'u32[]', space=smem, size = 0x4, offset = 0x4, fixed_abs, tag = 'smem constant byte address 0x4 - core index']
  #allocation1 [shape = 'u32[144,128]{1,0:T(1,128)}', space=vmem, size = 0x12000, scoped, tag = 'internal scratch']
  %s0 = inlined_call_operand.hbm [shape: f32[16,32], index: 0, kind: input, shape index: {}]
  %s1 = inlined_call_operand.hbm [shape: bf16[32,64], index: 1, kind: input, shape index: {}]
  %s2 = inlined_call_operand.vmem [shape: f32[1,64], index: 2, kind: input, shape index: {}]
  %s3 = inlined_call_operand.hbm [shape: f32[16,64], index: 3, kind: output, shape index: {}]
  %s4 = sld [smem:[#allocation0]]
  $region30: #{tpu_custom_call.1} parent=0
    _
  %s6 = ssub.s32 1, %s4
  %s7 = scalar_select 0, %s6, %s4
  $region1: #{tpu_custom_call.1} parent=0
    #allocation2 [shape = 'u8[8192]{0}', space=vmem, size = 0x2000, scoped, tag = 'input window, operand 0, single buffered']
    #allocation3 [shape = 's32[1]{0}', space=sflag, size = 0x4, scoped, tag = 'scoped memory for tpu_custom_call.1']
    #allocation4 [shape = 's32[1]{0}', space=sflag, size = 0x4, scoped, tag = 'scoped memory for tpu_custom_call.1']
    #allocation5 [shape = 'u8[8192]{0}', space=vmem, size = 0x2000, scoped, tag = 'input window, operand 1, single buffered']
    #allocation6 [shape = 's32[1]{0}', space=sflag, size = 0x4, scoped, tag = 'scoped memory for tpu_custom_call.1']
    #allocation7 [shape = 'u8[8192]{0}', space=vmem, size = 0x2000, scoped, tag = 'output window, operand 0, single buffered']
    %8 = vsyncpa [#allocation3], 0
    %9 = vsyncpa [#allocation6], 0
    %10 = vsyncpa [#allocation4], 0
    // Predicated region
    $region2: #{tpu_custom_call.1} parent=1 // pred_check
      _
    $region3: #{tpu_custom_call.1} parent=1 // pred_check_branch
      %12 = sbr.rel (0) target = $region5
    $region4: #{tpu_custom_call.1} parent=1 // pred_region
      %s14 = ssub.s32 256, 256
      %15 = vsyncadd [#allocation3], %s14
      %s16 = sshll.u32 [#allocation2], 4
      %s17 = int_to_ptr.vmem [resolvable:$true] %s16
      %22 = dma.hbm_to_vmem [thread:$0]  %s0, 256, %s17, [#allocation3], 128, 128, 8
    $region5: #{tpu_custom_call.1} parent=1 // pred_fallthru
      _
    // Predicated region
    $region6: #{tpu_custom_call.1} parent=1 // pred_check
      _
    $region7: #{tpu_custom_call.1} parent=1 // pred_check_branch
      %24 = sbr.rel (0) target = $region9
    $region8: #{tpu_custom_call.1} parent=1 // pred_region
      %s26 = ssub.s32 256, 256
      %27 = vsyncadd [#allocation6], %s26
      %s28 = sshll.u32 [#allocation5], 4
      %s29 = int_to_ptr.vmem [resolvable:$true] %s28
      %34 = dma.hbm_to_vmem [thread:$0]  %s1, 256, %s29, [#allocation6], 64, 64, 4
    $region9: #{tpu_custom_call.1} parent=1 // pred_fallthru
      _
    // Predicated region
    $region10: #{tpu_custom_call.1} parent=1 // pred_check
      _
    $region11: #{tpu_custom_call.1} parent=1 // pred_check_branch
      %36 = sbr.rel (0) target = $region13
    $region12: #{tpu_custom_call.1} parent=1 // pred_region
      _
    $region13: #{tpu_custom_call.1} parent=1 // pred_fallthru
      _
    // Predicated region
    $region14: #{tpu_custom_call.1} parent=1 // pred_check
      _
    $region15: #{tpu_custom_call.1} parent=1 // pred_check_branch
      %38 = sbr.rel (0) target = $region17
    $region16: #{tpu_custom_call.1} parent=1 // pred_region
      %39 = dma.done [#allocation3], 256
    $region17: #{tpu_custom_call.1} parent=1 // pred_fallthru
      _
    // Predicated region
    $region18: #{tpu_custom_call.1} parent=1 // pred_check
      _
    $region19: #{tpu_custom_call.1} parent=1 // pred_check_branch
      %41 = sbr.rel (0) target = $region21
    $region20: #{tpu_custom_call.1} parent=1 // pred_region
      %42 = dma.done [#allocation6], 256
    $region21: #{tpu_custom_call.1} parent=1 // pred_fallthru
      _
    %v44 = vld [vmem:[#allocation2] sm:$0xff]
    %v45 = vld [vmem:[#allocation2 + $0x8] sm:$0xff]
    %v46 = vpack.c.bf16 %v45, %v44
    %v47 = vld [vmem:[#allocation5] sm:$0xf]
    %v48 = vld [vmem:[#allocation5 + $0x4] sm:$0xf]
    %v49 = vld [vmem:[#allocation5 + $0x8] sm:$0xf]
    %v50 = vld [vmem:[#allocation5 + $0xc] sm:$0xf]
    %v51 = vld [vmem:[%s2] sm:$0x1]
    %v53 = vlaneseq
    %v54 = vshrl.u32 %v53, 7
    %v55 = vsub.s32 0, %v54
    %v56 = vrot.slane %v51, %v55
    %v62 = vunpack.c.l.b16 %v47
    %v63 = vunpack.c.l.b16 %v48
    %v64 = vunpack.c.l.b16 %v49
    %v65 = vunpack.c.l.b16 %v50
    %v66 = vpack.c.b16 %v63, %v62
    %v67 = vpack.c.b16 %v65, %v64
    %vm70 = vcmask 261120
    %v72 = vsel %vm70, %v46, 0
    %74 = vmatprep.subr.bf16.mxu0 0
    %75 = vmatpush1.bf16.msra.mxu0 %v66
    %76 = vmatprep.subr.bf16.mxu0 0
    %77 = vmatpush1.bf16.msra.mxu0 %v67
    %78 = vmatprep.subr.bf16.mxu0 0
    %79 = vmatpush1.bf16.msra.mxu0 0
    %80 = vmatprep.subr.bf16.mxu0 0
    %81 = vmatpush1.bf16.msra.mxu0 0
    %82 = vmatprep.subr.bf16.mxu0 0
    %83 = vmatpush1.bf16.msra.mxu0 0
    %84 = vmatprep.subr.bf16.mxu0 0
    %85 = vmatpush1.bf16.msra.mxu0 0
    %86 = vmatprep.subr.bf16.mxu0 0
    %87 = vmatpush1.bf16.msra.mxu0 0
    %88 = vmatprep.subr.bf16.mxu0 0
    %89 = vmatpush1.bf16.msra.mxu0 0
    %90 = vmatprep.subr.bf16.mxu0 0
    %91 = vmatpush1.bf16.msra.mxu0 0
    %92 = vmatprep.subr.bf16.mxu0 0
    %93 = vmatpush1.bf16.msra.mxu0 0
    %94 = vmatprep.subr.bf16.mxu0 0
    %95 = vmatpush1.bf16.msra.mxu0 0
    %96 = vmatprep.subr.bf16.mxu0 0
    %97 = vmatpush1.bf16.msra.mxu0 0
    %98 = vmatprep.subr.bf16.mxu0 0
    %99 = vmatpush1.bf16.msra.mxu0 0
    %100 = vmatprep.subr.bf16.mxu0 0
    %101 = vmatpush1.bf16.msra.mxu0 0
    %102 = vmatprep.subr.bf16.mxu0 0
    %103 = vmatpush1.bf16.msra.mxu0 0
    %104 = vmatprep.subr.bf16.mxu0 0
    %105 = vmatpush1.bf16.msra.mxu0 0
    %106 = vmatprep.mubr.bf16.mxu0 0
    %107 = vmatmul.mubr.bf16.gmra.mrb[0].mxu0 %v72
    %v108 = vpop.f32.mrb[0].mxu0
    %v109 = vadd.f32 %v56, %v108
    %v110 = vpop.f32.mrb[0].mxu0
    %v111 = vpop.f32.mrb[0].mxu0
    %v112 = vadd.f32 %v56, %v111
    %v113 = vpop.f32.mrb[0].mxu0
    %114 = vdwg.mxu0
    %vm115 = vcmask 523264
    %116 = vst.msk [vmem:[#allocation7] sm:$0xff] %vm115, %v109
    %117 = vst.msk [vmem:[#allocation7 + $0x8] sm:$0xff] %vm115, %v112
    // Predicated region
    $region22: #{tpu_custom_call.1} parent=1 // pred_check
      _
    $region23: #{tpu_custom_call.1} parent=1 // pred_check_branch
      %119 = sbr.rel (0) target = $region25
    $region24: #{tpu_custom_call.1} parent=1 // pred_region
      %s121 = ssub.s32 256, 256
      %122 = vsyncadd [#allocation4], %s121
      %s123 = sshll.u32 [#allocation7], 4
      %s124 = int_to_ptr.vmem [resolvable:$true] %s123
      %129 = dma.vmem_to_hbm [thread:$0]  %s124, 256, %s3, [#allocation4], 128, 128, 8
    $region25: #{tpu_custom_call.1} parent=1 // pred_fallthru
      _
    // Predicated region
    $region26: #{tpu_custom_call.1} parent=1 // pred_check
      _
    $region27: #{tpu_custom_call.1} parent=1 // pred_check_branch
      %131 = sbr.rel (0) target = $region29
    $region28: #{tpu_custom_call.1} parent=1 // pred_region
      %132 = dma.done [#allocation4], 256
    $region29: #{tpu_custom_call.1} parent=1 // pred_fallthru
      _
    %133 = vsyncpa [#allocation3], 1
    %134 = vsyncpa [#allocation6], 1
    %135 = vsyncpa [#allocation4], 1

</llo_original>
